<compile_context>
chip_gen: v5e
topology: v5e:2x2
jax: 0.10.0
libtpu: 0.0.40
codegen_flags: <defaults>
</compile_context>

<pallas_src>
import jax
import jax.numpy as jnp
from jax.experimental import pallas as pl
from jax.experimental.pallas import tpu as pltpu


# ----------------------------------------------------------------------------
# helpers
# ----------------------------------------------------------------------------
def _pick_tile(dim: int, preferred: int, granule: int) -> int:
    """Largest tile <= preferred that is a multiple of `granule` and divides `dim`.
    Falls back to the full dimension (always a legal block size)."""
    if dim <= preferred:
        return dim
    t = (preferred // granule) * granule
    while t >= granule:
        if dim % t == 0:
            return t
        t -= granule
    return dim


# ----------------------------------------------------------------------------
# Kernel 1: exact forward() semantics — identity passthrough.
# ----------------------------------------------------------------------------
def adapter_e_forward(v_features: jax.Array) -> jax.Array:
    """Exact reproduction of AdapterE.forward: returns v_features unchanged (zero cost)."""
    return v_features


def _copy_kernel(x_ref, o_ref):
    o_ref[...] = x_ref[...]


def adapter_e_forward_copy(v_features: jax.Array) -> jax.Array:
    """Optional materialized identity as a tiled, pipelined Pallas copy."""
    shape = v_features.shape
    last = shape[-1]
    rows = 1
    for d in shape[:-1]:
        rows *= d
    x2d = v_features.reshape(rows, last)
    tr = _pick_tile(rows, 512, 8)          # lane-dense blocks, >= 512 rows when possible
    grid = (rows // tr,)
    out = pl.pallas_call(
        _copy_kernel,
        out_shape=jax.ShapeDtypeStruct((rows, last), v_features.dtype),
        grid=grid,
        in_specs=[pl.BlockSpec((tr, last), lambda i: (i, 0))],
        out_specs=pl.BlockSpec((tr, last), lambda i: (i, 0)),
        compiler_params=pltpu.CompilerParams(dimension_semantics=("parallel",)),
    )(x2d)
    return out.reshape(shape)


# ----------------------------------------------------------------------------
# Kernel 2: fused Linear -> GELU -> LayerNorm (the compute implied by __init__),
# K-tiled with a resident f32 accumulator and an epilogue under pl.when.
# ----------------------------------------------------------------------------
_INV_SQRT2 = 0.7071067811865476  # hoisted 1/sqrt(2)


def _adapter_kernel(x_ref, w_ref, b_ref, g_ref, beta_ref, o_ref, acc_ref):
    k = pl.program_id(1)

    @pl.when(k == 0)
    def _():
        acc_ref[...] = jnp.zeros_like(acc_ref)

    # bf16 x bf16 -> f32 accumulate on the MXU (no f32 upcast of operands).
    acc_ref[...] += jnp.dot(x_ref[...], w_ref[...],
                            preferred_element_type=jnp.float32)

    @pl.when(k == pl.num_programs(1) - 1)
    def _():
        h = acc_ref[...] + b_ref[...].astype(jnp.float32)
        # exact (erf-based) GELU, matching nn.GELU() default — epilogue runs once.
        h = 0.5 * h * (1.0 + jax.lax.erf(h * _INV_SQRT2))
        # LayerNorm over the full n_embd row, eps = 1e-5 (nn.LayerNorm default).
        mean = jnp.mean(h, axis=-1, keepdims=True)
        var = jnp.mean(jnp.square(h - mean), axis=-1, keepdims=True)
        y = (h - mean) * jax.lax.rsqrt(var + 1e-5)
        y = y * g_ref[...].astype(jnp.float32) + beta_ref[...].astype(jnp.float32)
        o_ref[...] = y.astype(o_ref.dtype)


def adapter_e_adapter_path(v_features, w, b, gamma, beta, *, tm=None, tk=None):
    """ln(gelu(linear(v_features))): fused, tiled Pallas kernel.

    v_features: (B, T, K) with K = chunk_len * v_feature_dim
    w:          (K, N)   (= PyTorch Linear weight.T), N = n_embd
    b, gamma, beta: (N,)
    """
    B, T, K = v_features.shape
    N = w.shape[1]
    M = B * T
    out_dtype = v_features.dtype

    # Feed the MXU bf16 operands; keep the epilogue / accumulator in f32.
    x_bf = v_features.reshape(M, K).astype(jnp.bfloat16)
    w_bf = w.astype(jnp.bfloat16)
    b2 = b.astype(jnp.float32).reshape(1, N)
    g2 = gamma.astype(jnp.float32).reshape(1, N)
    beta2 = beta.astype(jnp.float32).reshape(1, N)

    # Tile selection: M granule 8 (sublane), K granule 128 (lane).  Full N per
    # tile so LayerNorm sees the whole feature row.
    if tm is None:
        tm = _pick_tile(M, 256, 8)
    if tk is None:
        tk = _pick_tile(K, 512, 128)
    grid = (M // tm, K // tk)

    # Explicit scoped-VMEM budget from the estimated footprint (double-buffered
    # inputs/outputs + resident accumulator), capped at v7x's 64 MiB.
    out_bytes = jnp.dtype(out_dtype).itemsize
    est = 2 * (tm * tk * 2 + tk * N * 2 + 3 * N * 4 + tm * N * out_bytes) + tm * N * 4
    vmem_limit = int(min(max(2 * est, 16 * 1024 * 1024), 64 * 1024 * 1024))

    cost = pl.CostEstimate(
        flops=2 * M * K * N,
        transcendentals=M * N,
        bytes_accessed=M * K * 2 + K * N * 2 + M * N * out_bytes + 3 * N * 4,
    )

    out = pl.pallas_call(
        _adapter_kernel,
        out_shape=jax.ShapeDtypeStruct((M, N), out_dtype),
        grid_spec=pltpu.PrefetchScalarGridSpec(
            num_scalar_prefetch=0,
            grid=grid,
            in_specs=[
                pl.BlockSpec((tm, tk), lambda i, k: (i, k)),   # x tile
                pl.BlockSpec((tk, N), lambda i, k: (k, 0)),    # w tile
                pl.BlockSpec((1, N), lambda i, k: (0, 0)),     # bias
                pl.BlockSpec((1, N), lambda i, k: (0, 0)),     # gamma
                pl.BlockSpec((1, N), lambda i, k: (0, 0)),     # beta
            ],
            out_specs=pl.BlockSpec((tm, N), lambda i, k: (i, 0)),
            scratch_shapes=[pltpu.VMEM((tm, N), jnp.float32)],
        ),
        compiler_params=pltpu.CompilerParams(
            dimension_semantics=("parallel", "arbitrary"),
            vmem_limit_bytes=vmem_limit,
        ),
        cost_estimate=cost,
    )(x_bf, w_bf, b2, g2, beta2)
    return out.reshape(B, T, N)


def init_adapter_e_params(key, chunk_len, v_feature_dim, n_embd, dtype=jnp.float32):
    """Deterministic synthetic init for AdapterE's parameters."""
    k_w, k_b = jax.random.split(key)
    in_dim = chunk_len * v_feature_dim
    w = (jax.random.normal(k_w, (in_dim, n_embd), dtype=jnp.float32) * 0.02).astype(dtype)
    b = (jax.random.normal(k_b, (n_embd,), dtype=jnp.float32) * 0.02).astype(dtype)
    gamma = jnp.ones((n_embd,), dtype=dtype)   # nn.LayerNorm weight
    beta = jnp.zeros((n_embd,), dtype=dtype)   # nn.LayerNorm bias
    return w, b, gamma, beta


if __name__ == "__main__":
    # Small shapes consistent with the module (scaled down from 15/128/4096).
    chunk_len = 4
    v_feature_dim = 64
    n_embd = 128
    B, num_chunks = 2, 8
    in_dim = chunk_len * v_feature_dim  # 256

    key = jax.random.PRNGKey(0)
    k_x, k_p = jax.random.split(key)
    v_features = jax.random.normal(k_x, (B, num_chunks, in_dim), dtype=jnp.float32)
    w, b, gamma, beta = init_adapter_e_params(k_p, chunk_len, v_feature_dim, n_embd)

    # 1) Exact forward() semantics: identity (zero-cost) + tiled Pallas copy check.
    out = adapter_e_forward(v_features)
    assert out.shape == v_features.shape and out.dtype == v_features.dtype
    assert bool(jnp.array_equal(out, v_features))
    out_copy = jax.block_until_ready(adapter_e_forward_copy(v_features))
    assert bool(jnp.array_equal(out_copy, v_features))

    # 2) The adapter compute path (Linear -> GELU -> LayerNorm) as a fused kernel.
    #    Pass tm/tk explicitly so the small demo exercises the multi-step K
    #    accumulation and the pl.when epilogue (grid = (2, 2)).
    y = adapter_e_adapter_path(v_features, w, b, gamma, beta, tm=8, tk=128)
    y = jax.block_until_ready(y)
    assert y.shape == (B, num_chunks, n_embd)

    # Reference in plain JAX (operands bf16-quantized to match the MXU path).
    xq = v_features.reshape(B * num_chunks, in_dim).astype(jnp.bfloat16).astype(jnp.float32)
    wq = w.astype(jnp.bfloat16).astype(jnp.float32)
    h_ref = xq @ wq + b
    h_ref = 0.5 * h_ref * (1.0 + jax.lax.erf(h_ref / jnp.sqrt(2.0)))
    mu = h_ref.mean(-1, keepdims=True)
    var = ((h_ref - mu) ** 2).mean(-1, keepdims=True)
    y_ref = ((h_ref - mu) * jax.lax.rsqrt(var + 1e-5)) * gamma + beta
    assert bool(jnp.allclose(y.reshape(B * num_chunks, n_embd), y_ref, atol=5e-3, rtol=5e-3))

    # Also exercise the auto-picked tiling path once.
    y2 = jax.block_until_ready(adapter_e_adapter_path(v_features, w, b, gamma, beta))
    assert bool(jnp.allclose(y2.reshape(B * num_chunks, n_embd), y_ref, atol=5e-3, rtol=5e-3))

    print("KERNEL_OK")
</pallas_src>

<mosaic_0001>
module attributes {stable_mosaic.version = 11 : i64} {
  func.func @_copy_kernel(%arg0: i32, %arg1: memref<16x256xf32, #tpu.memory_space<vmem>>, %arg2: memref<16x256xf32, #tpu.memory_space<vmem>>) attributes {dimension_semantics = [#tpu.dimension_semantics<parallel>], iteration_bounds = array<i64: 1>, scalar_prefetch = 0 : i64, scratch_operands = 0 : i64, tpu.core_type = #tpu.core_type<tc>, window_params = [{transform_indices = @transform_0, window_bounds = array<i64: 16, 256>}, {transform_indices = @transform_1, window_bounds = array<i64: 16, 256>}]} {
    %c0 = arith.constant 0 : index
    %c0_0 = arith.constant 0 : index
    %0 = vector.load %arg1[%c0, %c0_0] : memref<16x256xf32, #tpu.memory_space<vmem>>, vector<16x256xf32>
    %c0_1 = arith.constant 0 : index
    %c0_2 = arith.constant 0 : index
    %1 = vector.load %arg2[%c0_1, %c0_2] : memref<16x256xf32, #tpu.memory_space<vmem>>, vector<16x256xf32>
    tpu.vector_store %arg2[%c0_1, %c0_2], %0 {strides = array<i32>} : memref<16x256xf32, #tpu.memory_space<vmem>>, vector<16x256xf32>,
    return
  }
  func.func @transform_0(%arg0: i32) -> (i32, i32) {
    %c0_i32 = arith.constant 0 : i32
    %c0_i32_0 = arith.constant 0 : i32
    return %arg0, %c0_i32 : i32, i32
  }
  func.func @transform_1(%arg0: i32) -> (i32, i32) {
    %c0_i32 = arith.constant 0 : i32
    %c0_i32_0 = arith.constant 0 : i32
    return %arg0, %c0_i32 : i32, i32
  }
}

</mosaic_0001>

<llo_original>
// kernel: tpu_custom_call.1
$region0: #{tpu_custom_call.1}
  #allocation0 [shape = 'u32[]', space=smem, size = 0x4, offset = 0x4, fixed_abs, tag = 'smem constant byte address 0x4 - core index']
  #allocation1 [shape = 'u32[72,128]{1,0:T(1,128)}', space=vmem, size = 0x9000, scoped, tag = 'internal scratch']
  %s0 = inlined_call_operand.hbm [shape: f32[16,256], index: 0, kind: input, shape index: {}]
  %s1 = inlined_call_operand.hbm [shape: f32[16,256], index: 1, kind: output, shape index: {}]
  %s2 = sld [smem:[#allocation0]]
  $region18: #{tpu_custom_call.1} parent=0
    _
  %s4 = ssub.s32 1, %s2
  %s5 = scalar_select 0, %s4, %s2
  $region1: #{tpu_custom_call.1} parent=0
    #allocation2 [shape = 'u8[16384]{0}', space=vmem, size = 0x4000, scoped, tag = 'input window, operand 0, single buffered']
    #allocation3 [shape = 's32[1]{0}', space=sflag, size = 0x4, scoped, tag = 'scoped memory for tpu_custom_call.1']
    #allocation4 [shape = 's32[1]{0}', space=sflag, size = 0x4, scoped, tag = 'scoped memory for tpu_custom_call.1']
    #allocation5 [shape = 'u8[16384]{0}', space=vmem, size = 0x4000, scoped, tag = 'output window, operand 0, single buffered']
    %6 = vsyncpa [#allocation3], 0
    %7 = vsyncpa [#allocation4], 0
    // Predicated region
    $region2: #{tpu_custom_call.1} parent=1 // pred_check
      _
    $region3: #{tpu_custom_call.1} parent=1 // pred_check_branch
      %9 = sbr.rel (0) target = $region5
    $region4: #{tpu_custom_call.1} parent=1 // pred_region
      %11 = vsyncadd [#allocation3], 0
      %s12 = sshll.u32 %s0, 4
      %s13 = int_to_ptr.hbm [resolvable:$true] %s12
      %s14 = sshll.u32 [#allocation2], 4
      %s15 = int_to_ptr.vmem [resolvable:$true] %s14
      %20 = dma.hbm_to_vmem [thread:$0]  %s13, 512, %s15, [#allocation3], 256, 256, 16
    $region5: #{tpu_custom_call.1} parent=1 // pred_fallthru
      _
    // Predicated region
    $region6: #{tpu_custom_call.1} parent=1 // pred_check
      _
    $region7: #{tpu_custom_call.1} parent=1 // pred_check_branch
      %22 = sbr.rel (0) target = $region9
    $region8: #{tpu_custom_call.1} parent=1 // pred_region
      %24 = dma.done [#allocation3], 512
    $region9: #{tpu_custom_call.1} parent=1 // pred_fallthru
      _
    %v25 = vld [vmem:[#allocation2] sm:$0xff]
    %v26 = vld [vmem:[#allocation2 + $0x8] sm:$0xff]
    %v27 = vld [vmem:[#allocation2 + $0x10] sm:$0xff]
    %v28 = vld [vmem:[#allocation2 + $0x18] sm:$0xff]
    %29 = vst [vmem:[#allocation5] sm:$0xff] %v25
    %30 = vst [vmem:[#allocation5 + $0x8] sm:$0xff] %v26
    %31 = vst [vmem:[#allocation5 + $0x10] sm:$0xff] %v27
    %32 = vst [vmem:[#allocation5 + $0x18] sm:$0xff] %v28
    // Predicated region
    $region10: #{tpu_custom_call.1} parent=1 // pred_check
      _
    $region11: #{tpu_custom_call.1} parent=1 // pred_check_branch
      %34 = sbr.rel (0) target = $region13
    $region12: #{tpu_custom_call.1} parent=1 // pred_region
      %36 = vsyncadd [#allocation4], 0
      %s37 = sshll.u32 [#allocation5], 4
      %s38 = int_to_ptr.vmem [resolvable:$true] %s37
      %s39 = sshll.u32 %s1, 4
      %s40 = int_to_ptr.hbm [resolvable:$true] %s39
      %45 = dma.vmem_to_hbm [thread:$0]  %s38, 512, %s40, [#allocation4], 256, 256, 16
    $region13: #{tpu_custom_call.1} parent=1 // pred_fallthru
      _
    // Predicated region
    $region14: #{tpu_custom_call.1} parent=1 // pred_check
      _
    $region15: #{tpu_custom_call.1} parent=1 // pred_check_branch
      %47 = sbr.rel (0) target = $region17
    $region16: #{tpu_custom_call.1} parent=1 // pred_region
      %49 = dma.done [#allocation4], 512
    $region17: #{tpu_custom_call.1} parent=1 // pred_fallthru
      _
    %50 = vsyncpa [#allocation3], 1
    %51 = vsyncpa [#allocation4], 1

</llo_original>
